<compile_context>
chip_gen: v7x
topology: tpu7x:2x2x1
jax: 0.10.0
libtpu: 0.0.40
codegen_flags: <defaults>
</compile_context>

<pallas_src>
import jax
import jax.numpy as jnp
from jax import lax
from jax.experimental import pallas as pl
from jax.experimental.pallas import tpu as pltpu


def _cdiv(a, b):
    return -(-a // b)


def _round_up(x, m):
    return ((x + m - 1) // m) * m


def _make_rec_kernel(rows, tm, needs_mask):
    """Streaming kernel for one (tm, tn) tile of the flattened sample/target.

    Emits the elementwise squared error (input dtype) and a sublane-reduced
    per-tile partial sum (f32, lane-dense)."""

    def kernel(s_ref, t_ref, nll_ref, part_ref):
        s = s_ref[...].astype(jnp.float32)
        t = t_ref[...].astype(jnp.float32)
        diff = s - t
        sq = diff * diff

        # Elementwise reconstruction loss, written back in the input dtype
        # (writeback is 1/3 of HBM traffic; keep it as narrow as the inputs).
        # Out-of-bounds rows of a partial last block are dropped by Pallas.
        nll_ref[...] = sq.astype(nll_ref.dtype)

        if needs_mask:
            # Last tile overhangs the slab: zero the out-of-range rows before
            # summing.  jnp.where (select, not multiply) so garbage inf/nan
            # in the overhang cannot leak into the sum.
            j = pl.program_id(0)
            row_ids = lax.broadcasted_iota(jnp.int32, sq.shape, 0)
            sq = jnp.where(row_ids < rows - j * tm, sq, 0.0)

        # Sublane-only reduce (cheap, hides under DMA); the final cross-lane
        # reduce of grid*tn values happens once in the wrapper.
        part_ref[...] = jnp.sum(sq, axis=0, keepdims=True).reshape(
            1, 1, sq.shape[1])

    return kernel


def factor_vae_loss(sample, target_sample, mu_post, sigma_post, mu_pred,
                    sigma_pred, kl_loss_weight=1e-6, nll_loss_weight=1.0,
                    max_rows_per_tile=512):
    assert sample.shape == target_sample.shape
    orig_shape = sample.shape
    batch = int(orig_shape[0])
    total = 1
    for d in orig_shape:
        total *= int(d)
    dtype = sample.dtype
    itemsize = jnp.dtype(dtype).itemsize
    # Packed-sublane tile of the input dtype: f32 -> 8, bf16 -> 16, int8 -> 32.
    sublane = {4: 8, 2: 16, 1: 32}.get(itemsize, 8)

    # ---- lane-dense packing of the flattened reconstruction term ----------
    padded_total = _round_up(total, 128)
    tn = next(c for c in (1024, 512, 256, 128) if padded_total % c == 0)
    rows = padded_total // tn
    pad = padded_total - total

    s_flat = sample.reshape(-1)
    t_flat = target_sample.reshape(-1)
    if pad:
        # Rare fallback (total not a multiple of 128): one small pad copy.
        # The appended zeros contribute 0 to the sums.
        s_flat = jnp.pad(s_flat, (0, pad))
        t_flat = jnp.pad(t_flat, (0, pad))
    s2 = s_flat.reshape(rows, tn)
    t2 = t_flat.reshape(rows, tn)

    # ---- tile-row selection ------------------------------------------------
    # Multiple of the packed-sublane tile, >=2 grid steps whenever possible
    # (v7x megacore sharding of the "parallel" axis), ragged last tile is
    # handled by the in-kernel mask rather than by padding the data.
    if rows <= sublane:
        tm = rows                      # block == full dim -> always legal
    else:
        tm = min(_round_up(max_rows_per_tile, sublane),
                 _round_up(_cdiv(rows, 2), sublane))
    grid = _cdiv(rows, tm)
    needs_mask = (rows % tm) != 0

    # ---- VMEM budget: 3 streams x 2 pipeline buffers x tile (+ partials) ---
    tile_bytes = tm * tn * 3 * itemsize + tn * 4
    vmem_limit = int(min(32 * 2**20,
                         max(16 * 2**20, 2 * tile_bytes + 4 * 2**20)))

    cost = pl.CostEstimate(
        flops=3 * rows * tn,
        transcendentals=0,
        bytes_accessed=rows * tn * 3 * itemsize + grid * tn * 4)

    nll2, nll_parts = pl.pallas_call(
        _make_rec_kernel(rows, tm, needs_mask),
        out_shape=(
            jax.ShapeDtypeStruct((rows, tn), dtype),
            jax.ShapeDtypeStruct((grid, 1, tn), jnp.float32),
        ),
        grid=(grid,),
        in_specs=[
            pl.BlockSpec((tm, tn), lambda j: (j, 0)),
            pl.BlockSpec((tm, tn), lambda j: (j, 0)),
        ],
        out_specs=(
            pl.BlockSpec((tm, tn), lambda j: (j, 0)),
            pl.BlockSpec((1, 1, tn), lambda j: (j, 0, 0)),
        ),
        compiler_params=pltpu.CompilerParams(
            dimension_semantics=("parallel",),
            vmem_limit_bytes=vmem_limit),
        cost_estimate=cost,
    )(s2, t2)

    # ---- wrapper-side finalization (tiny) ----------------------------------
    if pad:
        nll_loss = nll2.reshape(-1)[:total].reshape(orig_shape)
    else:
        nll_loss = nll2.reshape(orig_shape)       # free reshape, no copy

    nll_sum = jnp.sum(nll_parts)
    weighted_nll = nll_sum if nll_loss_weight is None else nll_loss_weight * nll_sum
    weighted_nll = weighted_nll / jnp.float32(batch)

    # KL on the few-KiB (B, D) latents: plain JAX per the perf review (it was
    # pure per-grid-step overhead inside the kernel); XLA overlaps it with
    # the streaming kernel.
    mu_p = mu_post.astype(jnp.float32)
    sg_p = sigma_post.astype(jnp.float32)
    mu_q = mu_pred.astype(jnp.float32)
    sg_q = sigma_pred.astype(jnp.float32)
    kl = (jnp.log(sg_q / sg_p)
          + (sg_p * sg_p + (mu_p - mu_q) ** 2) / (2.0 * sg_q * sg_q)
          - 0.5)
    weighted_kl = kl if kl_loss_weight is None else kl * kl_loss_weight
    weighted_kl = jnp.sum(weighted_kl) / jnp.float32(mu_post.shape[0])

    return dict(nll_loss=nll_loss,
                weighted_nll_loss=weighted_nll,
                weighted_kl_loss=weighted_kl)


def _reference(sample, target_sample, mu_post, sigma_post, mu_pred,
               sigma_pred, kl_loss_weight=1e-6, nll_loss_weight=1.0):
    rec = (sample - target_sample) ** 2
    w_nll = jnp.sum(nll_loss_weight * rec) / rec.shape[0]
    kl = (jnp.log(sigma_pred / sigma_post)
          + (sigma_post ** 2 + (mu_post - mu_pred) ** 2)
          / (2 * sigma_pred ** 2) - 0.5)
    w_kl = jnp.sum(kl * kl_loss_weight) / kl.shape[0]
    return dict(nll_loss=rec, weighted_nll_loss=w_nll, weighted_kl_loss=w_kl)


def _check(shape, latent, key):
    k1, k2, k3, k4, k5, k6 = jax.random.split(key, 6)
    sample = jax.random.normal(k1, shape, dtype=jnp.float32)
    target = jax.random.normal(k2, shape, dtype=jnp.float32)
    mu_post = jax.random.normal(k3, latent, dtype=jnp.float32)
    mu_pred = jax.random.normal(k4, latent, dtype=jnp.float32)
    sigma_post = jax.random.uniform(k5, latent, dtype=jnp.float32,
                                    minval=0.5, maxval=1.5)
    sigma_pred = jax.random.uniform(k6, latent, dtype=jnp.float32,
                                    minval=0.5, maxval=1.5)

    out = factor_vae_loss(sample, target, mu_post, sigma_post,
                          mu_pred, sigma_pred)
    jax.block_until_ready(out)
    ref = _reference(sample, target, mu_post, sigma_post, mu_pred, sigma_pred)

    assert jnp.allclose(out["nll_loss"], ref["nll_loss"], atol=1e-5)
    assert jnp.allclose(out["weighted_nll_loss"], ref["weighted_nll_loss"],
                        rtol=1e-5, atol=1e-5)
    assert jnp.allclose(out["weighted_kl_loss"], ref["weighted_kl_loss"],
                        rtol=1e-5, atol=1e-8)


if __name__ == "__main__":
    key = jax.random.PRNGKey(0)
    k_a, k_b, k_c = jax.random.split(key, 3)

    # Nicely shaped (total % 1024 == 0): single block, zero pad / zero slice.
    _check((2, 4, 16, 16), (2, 32), k_a)
    # Multi-step grid with a ragged last tile -> exercises the in-kernel mask.
    _check((2, 4, 32, 40), (2, 32), k_b)
    # Total not a multiple of 128 -> exercises the rare pad fallback path.
    _check((2, 3, 5, 7), (2, 32), k_c)

    print("KERNEL_OK")
</pallas_src>

<mosaic_0001>
module attributes {stable_mosaic.version = 11 : i64} {
  func.func @kernel(%arg0: i32, %arg1: memref<2x1024xf32, #tpu.memory_space<vmem>>, %arg2: memref<2x1024xf32, #tpu.memory_space<vmem>>, %arg3: memref<2x1024xf32, #tpu.memory_space<vmem>>, %arg4: memref<1x1x1024xf32, #tpu.memory_space<vmem>>) attributes {dimension_semantics = [#tpu.dimension_semantics<parallel>], iteration_bounds = array<i64: 1>, scalar_prefetch = 0 : i64, scratch_operands = 0 : i64, tpu.core_type = #tpu.core_type<tc>, window_params = [{transform_indices = @transform_0, window_bounds = array<i64: 2, 1024>}, {transform_indices = @transform_1, window_bounds = array<i64: 2, 1024>}, {transform_indices = @transform_2, window_bounds = array<i64: 2, 1024>}, {transform_indices = @transform_3, window_bounds = array<i64: 1, 1, 1024>}]} {
    %c0 = arith.constant 0 : index
    %c0_0 = arith.constant 0 : index
    %0 = vector.load %arg1[%c0, %c0_0] : memref<2x1024xf32, #tpu.memory_space<vmem>>, vector<2x1024xf32>
    %c0_1 = arith.constant 0 : index
    %c0_2 = arith.constant 0 : index
    %1 = vector.load %arg2[%c0_1, %c0_2] : memref<2x1024xf32, #tpu.memory_space<vmem>>, vector<2x1024xf32>
    %2 = arith.subf %0, %1 : vector<2x1024xf32>
    %3 = arith.mulf %2, %2 : vector<2x1024xf32>
    %c0_3 = arith.constant 0 : index
    %c0_4 = arith.constant 0 : index
    %4 = vector.load %arg3[%c0_3, %c0_4] : memref<2x1024xf32, #tpu.memory_space<vmem>>, vector<2x1024xf32>
    tpu.vector_store %arg3[%c0_3, %c0_4], %3 {strides = array<i32>} : memref<2x1024xf32, #tpu.memory_space<vmem>>, vector<2x1024xf32>,
    %cst = arith.constant dense<0.000000e+00> : vector<1024xf32>
    %5 = vector.multi_reduction <add>, %3, %cst [0] : vector<2x1024xf32> to vector<1024xf32>
    %6 = vector.shape_cast %5 : vector<1024xf32> to vector<1x1024xf32>
    %7 = vector.shape_cast %6 : vector<1x1024xf32> to vector<1x1x1024xf32>
    %c0_5 = arith.constant 0 : index
    %c0_6 = arith.constant 0 : index
    %c0_7 = arith.constant 0 : index
    %8 = vector.load %arg4[%c0_5, %c0_6, %c0_7] : memref<1x1x1024xf32, #tpu.memory_space<vmem>>, vector<1x1x1024xf32>
    tpu.vector_store %arg4[%c0_5, %c0_6, %c0_7], %7 {strides = array<i32>} : memref<1x1x1024xf32, #tpu.memory_space<vmem>>, vector<1x1x1024xf32>,
    return
  }
  func.func @transform_0(%arg0: i32) -> (i32, i32) {
    %c0_i32 = arith.constant 0 : i32
    %c0_i32_0 = arith.constant 0 : i32
    return %arg0, %c0_i32 : i32, i32
  }
  func.func @transform_1(%arg0: i32) -> (i32, i32) {
    %c0_i32 = arith.constant 0 : i32
    %c0_i32_0 = arith.constant 0 : i32
    return %arg0, %c0_i32 : i32, i32
  }
  func.func @transform_2(%arg0: i32) -> (i32, i32) {
    %c0_i32 = arith.constant 0 : i32
    %c0_i32_0 = arith.constant 0 : i32
    return %arg0, %c0_i32 : i32, i32
  }
  func.func @transform_3(%arg0: i32) -> (i32, i32, i32) {
    %c0_i32 = arith.constant 0 : i32
    %c0_i32_0 = arith.constant 0 : i32
    %c0_i32_1 = arith.constant 0 : i32
    return %arg0, %c0_i32, %c0_i32_0 : i32, i32, i32
  }
}

</mosaic_0001>

<llo_original>
// kernel: tpu_custom_call.1
$region0: #{tpu_custom_call.1}
  #allocation0 [shape = 'u32[]', space=smem, size = 0x4, offset = 0x4, fixed_abs, tag = 'smem constant byte address 0x4 - core index']
  #allocation1 [shape = 'u32[144,128]{1,0:T(1,128)}', space=vmem, size = 0x12000, scoped, tag = 'internal scratch']
  %s0 = inlined_call_operand.hbm [shape: f32[2,1024], index: 0, kind: input, shape index: {}]
  %s1 = inlined_call_operand.hbm [shape: f32[2,1024], index: 1, kind: input, shape index: {}]
  %s2 = inlined_call_operand.hbm [shape: f32[2,1024], index: 2, kind: output, shape index: {0}]
  %s3 = inlined_call_operand.hbm [shape: f32[1,1,1024], index: 3, kind: output, shape index: {1}]
  %4 = xla_tuple %s2, %s3
  %s5 = sld [smem:[#allocation0]]
  $region34: #{tpu_custom_call.1} parent=0
    _
  %s7 = ssub.s32 1, %s5
  %s8 = scalar_select 0, %s7, %s5
  $region1: #{tpu_custom_call.1} parent=0
    #allocation2 [shape = 'u8[8192]{0}', space=vmem, size = 0x2000, scoped, tag = 'input window, operand 0, single buffered']
    #allocation3 [shape = 's32[1]{0}', space=sflag, size = 0x4, scoped, tag = 'scoped memory for tpu_custom_call.1']
    #allocation4 [shape = 's32[1]{0}', space=sflag, size = 0x4, scoped, tag = 'scoped memory for tpu_custom_call.1']
    #allocation5 [shape = 'u8[8192]{0}', space=vmem, size = 0x2000, scoped, tag = 'input window, operand 1, single buffered']
    #allocation6 [shape = 's32[1]{0}', space=sflag, size = 0x4, scoped, tag = 'scoped memory for tpu_custom_call.1']
    #allocation7 [shape = 'u8[8192]{0}', space=vmem, size = 0x2000, scoped, tag = 'output window, operand 0, single buffered']
    #allocation8 [shape = 'u8[4096]{0}', space=vmem, size = 0x1000, scoped, tag = 'output window, operand 1, single buffered']
    #allocation9 [shape = 's32[1]{0}', space=sflag, size = 0x4, scoped, tag = 'scoped memory for tpu_custom_call.1']
    %9 = vsyncpa [#allocation3], 0
    %10 = vsyncpa [#allocation6], 0
    %11 = vsyncpa [#allocation4], 0
    %12 = vsyncpa [#allocation9], 0
    // Predicated region
    $region2: #{tpu_custom_call.1} parent=1 // pred_check
      _
    $region3: #{tpu_custom_call.1} parent=1 // pred_check_branch
      %14 = sbr.rel (0) target = $region5
    $region4: #{tpu_custom_call.1} parent=1 // pred_region
      %s16 = ssub.s32 256, 256
      %17 = vsyncadd [#allocation3], %s16
      %s19 = sshll.u32 [#allocation2], 4
      %s20 = int_to_ptr.vmem [resolvable:$true] %s19
      %22 = dma.hbm_to_vmem [thread:$0]  %s0, 256, %s20, [#allocation3]
    $region5: #{tpu_custom_call.1} parent=1 // pred_fallthru
      _
    // Predicated region
    $region6: #{tpu_custom_call.1} parent=1 // pred_check
      _
    $region7: #{tpu_custom_call.1} parent=1 // pred_check_branch
      %24 = sbr.rel (0) target = $region9
    $region8: #{tpu_custom_call.1} parent=1 // pred_region
      %s26 = ssub.s32 256, 256
      %27 = vsyncadd [#allocation6], %s26
      %s29 = sshll.u32 [#allocation5], 4
      %s30 = int_to_ptr.vmem [resolvable:$true] %s29
      %32 = dma.hbm_to_vmem [thread:$0]  %s1, 256, %s30, [#allocation6]
    $region9: #{tpu_custom_call.1} parent=1 // pred_fallthru
      _
    // Predicated region
    $region10: #{tpu_custom_call.1} parent=1 // pred_check
      _
    $region11: #{tpu_custom_call.1} parent=1 // pred_check_branch
      %34 = sbr.rel (0) target = $region13
    $region12: #{tpu_custom_call.1} parent=1 // pred_region
      %35 = dma.done [#allocation3], 256
    $region13: #{tpu_custom_call.1} parent=1 // pred_fallthru
      _
    // Predicated region
    $region14: #{tpu_custom_call.1} parent=1 // pred_check
      _
    $region15: #{tpu_custom_call.1} parent=1 // pred_check_branch
      %37 = sbr.rel (0) target = $region17
    $region16: #{tpu_custom_call.1} parent=1 // pred_region
      %38 = dma.done [#allocation6], 256
    $region17: #{tpu_custom_call.1} parent=1 // pred_fallthru
      _
    %v39 = vld [vmem:[#allocation2] sm:$0xff]
    %v40 = vld [vmem:[#allocation2 + $0x8] sm:$0xff]
    %v41 = vld [vmem:[#allocation5] sm:$0xff]
    %v42 = vld [vmem:[#allocation5 + $0x8] sm:$0xff]
    %v43 = vsub.f32 %v39, %v41
    %v44 = vsub.f32 %v40, %v42
    %v45 = vmul.f32 %v43, %v43
    %v46 = vmul.f32 %v44, %v44
    %47 = vst [vmem:[#allocation7] sm:$0xff] %v45
    %48 = vst [vmem:[#allocation7 + $0x8] sm:$0xff] %v46
    %v51 = vcombine.high %v45, %v45
    %v53 = vunpack.c.l.s4 1983009808
    %v54 = vunpack.c.0.s8 %v53
    %v55 = vlaneseq
    %v56 = vshrl.u32 %v55, 7
    %v57 = vsub.s32 %v54, %v56
    %v58 = vrot.slane %v45, %v57
    %v60 = vunpack.c.l.s4 1983009808
    %v61 = vunpack.c.0.s8 %v60
    %v62 = vlaneseq
    %v63 = vshrl.u32 %v62, 7
    %v64 = vsub.s32 %v61, %v63
    %v65 = vrot.slane %v51, %v64
    %v66 = vcombine.high %v58, %v58
    %v67 = vcombine.high %v65, %v65
    %v68 = vcombine.high %v46, %v46
    %v70 = vunpack.c.l.s4 1983009808
    %v71 = vunpack.c.0.s8 %v70
    %v72 = vlaneseq
    %v73 = vshrl.u32 %v72, 7
    %v74 = vsub.s32 %v71, %v73
    %v75 = vrot.slane %v46, %v74
    %v77 = vunpack.c.l.s4 1983009808
    %v78 = vunpack.c.0.s8 %v77
    %v79 = vlaneseq
    %v80 = vshrl.u32 %v79, 7
    %v81 = vsub.s32 %v78, %v80
    %v82 = vrot.slane %v68, %v81
    %v83 = vcombine.high %v75, %v75
    %v84 = vcombine.high %v82, %v82
    %vm93 = vcmask 1041408
    %v94 = vsel %vm93, %v58, 0.0
    %v95 = vrot.slane %v94, 4
    %v96 = vadd.f32 %v94, %v95
    %v97 = vrot.slane %v96, 2
    %v98 = vadd.f32 %v96, %v97
    %v99 = vrot.slane %v98, 1
    %v100 = vadd.f32 %v98, %v99
    %v101 = vsel %vm93, %v66, 0.0
    %v102 = vrot.slane %v101, 4
    %v103 = vadd.f32 %v101, %v102
    %v104 = vrot.slane %v103, 2
    %v105 = vadd.f32 %v103, %v104
    %v106 = vrot.slane %v105, 1
    %v107 = vadd.f32 %v105, %v106
    %v108 = vsel %vm93, %v65, 0.0
    %v109 = vrot.slane %v108, 4
    %v110 = vadd.f32 %v108, %v109
    %v111 = vrot.slane %v110, 2
    %v112 = vadd.f32 %v110, %v111
    %v113 = vrot.slane %v112, 1
    %v114 = vadd.f32 %v112, %v113
    %v115 = vsel %vm93, %v67, 0.0
    %v116 = vrot.slane %v115, 4
    %v117 = vadd.f32 %v115, %v116
    %v118 = vrot.slane %v117, 2
    %v119 = vadd.f32 %v117, %v118
    %v120 = vrot.slane %v119, 1
    %v121 = vadd.f32 %v119, %v120
    %v122 = vsel %vm93, %v75, 0.0
    %v123 = vrot.slane %v122, 4
    %v124 = vadd.f32 %v122, %v123
    %v125 = vrot.slane %v124, 2
    %v126 = vadd.f32 %v124, %v125
    %v127 = vrot.slane %v126, 1
    %v128 = vadd.f32 %v126, %v127
    %v129 = vsel %vm93, %v83, 0.0
    %v130 = vrot.slane %v129, 4
    %v131 = vadd.f32 %v129, %v130
    %v132 = vrot.slane %v131, 2
    %v133 = vadd.f32 %v131, %v132
    %v134 = vrot.slane %v133, 1
    %v135 = vadd.f32 %v133, %v134
    %v136 = vsel %vm93, %v82, 0.0
    %v137 = vrot.slane %v136, 4
    %v138 = vadd.f32 %v136, %v137
    %v139 = vrot.slane %v138, 2
    %v140 = vadd.f32 %v138, %v139
    %v141 = vrot.slane %v140, 1
    %v142 = vadd.f32 %v140, %v141
    %v143 = vsel %vm93, %v84, 0.0
    %v144 = vrot.slane %v143, 4
    %v145 = vadd.f32 %v143, %v144
    %v146 = vrot.slane %v145, 2
    %v147 = vadd.f32 %v145, %v146
    %v148 = vrot.slane %v147, 1
    %v149 = vadd.f32 %v147, %v148
    %v158 = vcombine.low %v100, %v107
    %v159 = vcombine.low %v114, %v121
    %v160 = vcombine.low %v128, %v135
    %v161 = vcombine.low %v142, %v149
    %v163 = vunpack.c.l.s4 1966171168
    %v164 = vunpack.c.0.s8 %v163
    %v165 = vlaneseq
    %v166 = vshrl.u32 %v165, 7
    %v167 = vsub.s32 %v164, %v166
    %v168 = vrot.slane %v158, %v167
    %v170 = vunpack.c.l.s4 1966171168
    %v171 = vunpack.c.0.s8 %v170
    %v172 = vlaneseq
    %v173 = vshrl.u32 %v172, 7
    %v174 = vsub.s32 %v171, %v173
    %v175 = vrot.slane %v159, %v174
    %v177 = vunpack.c.l.s4 1966171168
    %v178 = vunpack.c.0.s8 %v177
    %v179 = vlaneseq
    %v180 = vshrl.u32 %v179, 7
    %v181 = vsub.s32 %v178, %v180
    %v182 = vrot.slane %v160, %v181
    %v184 = vunpack.c.l.s4 1966171168
    %v185 = vunpack.c.0.s8 %v184
    %v186 = vlaneseq
    %v187 = vshrl.u32 %v186, 7
    %v188 = vsub.s32 %v185, %v187
    %v189 = vrot.slane %v161, %v188
    %v190 = vcombine.low %v168, %v175
    %v191 = vcombine.low %v182, %v189
    %v193 = vunpack.c.l.s4 1966171168
    %v194 = vunpack.c.0.s8 %v193
    %v195 = vlaneseq
    %v196 = vshrl.u32 %v195, 7
    %v197 = vsub.s32 %v194, %v196
    %v198 = vrot.slane %v190, %v197
    %v200 = vunpack.c.l.s4 1966171168
    %v201 = vunpack.c.0.s8 %v200
    %v202 = vlaneseq
    %v203 = vshrl.u32 %v202, 7
    %v204 = vsub.s32 %v201, %v203
    %v205 = vrot.slane %v191, %v204
    %v206 = vcombine.low %v198, %v205
    %208 = vst [vmem:[#allocation8] sm:$0xff] %v206
    // Predicated region
    $region18: #{tpu_custom_call.1} parent=1 // pred_check
      _
    $region19: #{tpu_custom_call.1} parent=1 // pred_check_branch
      %210 = sbr.rel (0) target = $region21
    $region20: #{tpu_custom_call.1} parent=1 // pred_region
      %s212 = ssub.s32 256, 256
      %213 = vsyncadd [#allocation4], %s212
      %s215 = sshll.u32 [#allocation7], 4
      %s216 = int_to_ptr.vmem [resolvable:$true] %s215
      %218 = dma.vmem_to_hbm [thread:$0]  %s216, 256, %s2, [#allocation4]
    $region21: #{tpu_custom_call.1} parent=1 // pred_fallthru
      _
    // Predicated region
    $region22: #{tpu_custom_call.1} parent=1 // pred_check
      _
    $region23: #{tpu_custom_call.1} parent=1 // pred_check_branch
      %220 = sbr.rel (0) target = $region25
    $region24: #{tpu_custom_call.1} parent=1 // pred_region
      %s222 = ssub.s32 128, 128
      %223 = vsyncadd [#allocation9], %s222
      %s225 = sshll.u32 [#allocation8], 4
      %s226 = int_to_ptr.vmem [resolvable:$true] %s225
      %228 = dma.vmem_to_hbm [thread:$0]  %s226, 128, %s3, [#allocation9]
    $region25: #{tpu_custom_call.1} parent=1 // pred_fallthru
      _
    // Predicated region
    $region26: #{tpu_custom_call.1} parent=1 // pred_check
      _
    $region27: #{tpu_custom_call.1} parent=1 // pred_check_branch
      %230 = sbr.rel (0) target = $region29
    $region28: #{tpu_custom_call.1} parent=1 // pred_region
      %231 = dma.done [#allocation4], 256
    $region29: #{tpu_custom_call.1} parent=1 // pred_fallthru
      _
    // Predicated region
    $region30: #{tpu_custom_call.1} parent=1 // pred_check
      _
    $region31: #{tpu_custom_call.1} parent=1 // pred_check_branch
      %233 = sbr.rel (0) target = $region33
    $region32: #{tpu_custom_call.1} parent=1 // pred_region
      %234 = dma.done [#allocation9], 128
    $region33: #{tpu_custom_call.1} parent=1 // pred_fallthru
      _
    %235 = vsyncpa [#allocation3], 1
    %236 = vsyncpa [#allocation6], 1
    %237 = vsyncpa [#allocation4], 1
    %238 = vsyncpa [#allocation9], 1

</llo_original>
